<compile_context>
chip_gen: v7x
topology: tpu7x:2x2x1
jax: 0.10.0
libtpu: 0.0.40
codegen_flags: <defaults>
</compile_context>

<pallas_src>
import jax
import jax.numpy as jnp
from jax.experimental import pallas as pl
from jax.experimental.pallas import tpu as pltpu


def linear_kernel(w_ref, b_ref, xt_ref, yt_ref):
    # w_ref : SMEM (OUT, IN)  -- PyTorch-layout weight, read as scalars
    # b_ref : SMEM (1, OUT)   -- bias, read as scalars
    # xt_ref: VMEM (IN, TB)   -- batch on the lane axis
    # yt_ref: VMEM (OUT, TB)  -- batch on the lane axis (lane-dense store)
    IN = xt_ref.shape[0]
    OUT = yt_ref.shape[0]

    x = xt_ref[...]  # single lane-dense load of the whole (IN, TB) tile

    rows = []
    for o in range(OUT):                      # OUT * IN = 15 VPU broadcast-FMAs
        acc = x[0:1, :] * w_ref[o, 0] + b_ref[0, o]
        for k in range(1, IN):
            acc = acc + x[k:k + 1, :] * w_ref[o, k]
        rows.append(acc)                      # (1, TB) each, all f32

    # One lane-dense store of the full (OUT, TB) tile.
    yt_ref[...] = jnp.concatenate(rows, axis=0)


def model_forward(x, weight, bias, *, tb=8192):
    """x: (B, IN) f32; weight: (OUT, IN) f32; bias: (OUT,) f32 -> (B*3, OUT)."""
    B, IN = x.shape
    OUT = weight.shape[0]

    # Lane-dense layout: put the (large) batch dimension on the lane axis.
    xt = x.T  # (IN, B)

    if B > tb:
        TB = tb                                  # multiple of 128
        Bp = pl.cdiv(B, TB) * TB
        if Bp != B:
            xt = jnp.pad(xt, ((0, 0), (0, Bp - B)))  # padded cols are discarded
    else:
        TB = B                                   # full-extent block (always legal)
        Bp = B

    grid = (Bp // TB,)
    bias2d = bias.reshape(1, OUT)

    yt = pl.pallas_call(
        linear_kernel,
        out_shape=jax.ShapeDtypeStruct((OUT, Bp), jnp.float32),
        grid=grid,
        in_specs=[
            # Tiny parameters live in SMEM as scalars (no VMEM padding /
            # per-use broadcast rematerialization).
            pl.BlockSpec(memory_space=pltpu.MemorySpace.SMEM),  # weight (OUT, IN)
            pl.BlockSpec(memory_space=pltpu.MemorySpace.SMEM),  # bias   (1, OUT)
            # Batch-blocked activation: double-buffered across the grid.
            pl.BlockSpec((IN, TB), lambda i: (0, i)),           # xt (IN, Bp)
        ],
        out_specs=pl.BlockSpec((OUT, TB), lambda i: (0, i)),    # yt (OUT, Bp)
        compiler_params=pltpu.CompilerParams(
            dimension_semantics=("parallel",),   # shard batch blocks across TCs
        ),
    )(weight, bias2d, xt)

    y = yt[:, :B].T  # (B, OUT)

    # torch.stack((y, y, y), dim=1) + torch.flatten(end_dim=1):
    # pure layout -> wrapper-side broadcast + reshape (XLA fuses into consumer),
    # so the kernel never writes the 3x-replicated data.
    return jnp.broadcast_to(y[:, None, :], (B, 3, OUT)).reshape(B * 3, OUT)


if __name__ == "__main__":
    key = jax.random.PRNGKey(0)
    kx, kw, kb = jax.random.split(key, 3)

    B, IN, OUT = 2, 5, 3
    x = jax.random.normal(kx, (B, IN), dtype=jnp.float32)

    # Deterministic Linear(5, 3) parameters (PyTorch-style uniform init bound).
    bound = 1.0 / jnp.sqrt(jnp.float32(IN))
    weight = jax.random.uniform(kw, (OUT, IN), dtype=jnp.float32,
                                minval=-bound, maxval=bound)
    bias = jax.random.uniform(kb, (OUT,), dtype=jnp.float32,
                              minval=-bound, maxval=bound)

    out = model_forward(x, weight, bias)
    out = jax.block_until_ready(out)

    # Reference check in plain JAX.
    y_ref = x @ weight.T + bias
    ref = jnp.stack((y_ref, y_ref, y_ref), axis=1).reshape(B * 3, OUT)
    assert out.shape == (B * 3, OUT)
    assert jnp.allclose(out, ref, atol=1e-5), "mismatch vs reference"

    print("KERNEL_OK")
</pallas_src>

<mosaic_0001>
module attributes {stable_mosaic.version = 11 : i64} {
  func.func @linear_kernel(%arg0: i32, %arg1: memref<3x5xf32, #tpu.memory_space<smem>>, %arg2: memref<1x3xf32, #tpu.memory_space<smem>>, %arg3: memref<5x2xf32, #tpu.memory_space<vmem>>, %arg4: memref<3x2xf32, #tpu.memory_space<vmem>>) attributes {dimension_semantics = [#tpu.dimension_semantics<parallel>], iteration_bounds = array<i64: 1>, scalar_prefetch = 0 : i64, scratch_operands = 0 : i64, tpu.core_type = #tpu.core_type<tc>, window_params = [{transform_indices = @transform_0, window_bounds = array<i64: 3, 5>}, {transform_indices = @transform_1, window_bounds = array<i64: 1, 3>}, {transform_indices = @transform_2, window_bounds = array<i64: 5, 2>}, {transform_indices = @transform_3, window_bounds = array<i64: 3, 2>}]} {
    %c0 = arith.constant 0 : index
    %c0_0 = arith.constant 0 : index
    %0 = vector.load %arg3[%c0, %c0_0] : memref<5x2xf32, #tpu.memory_space<vmem>>, vector<5x2xf32>
    %1 = vector.extract_strided_slice %0 {offsets = [0, 0], sizes = [1, 2], strides = [1, 1]} : vector<5x2xf32> to vector<1x2xf32>
    %c0_1 = arith.constant 0 : index
    %c0_2 = arith.constant 0 : index
    %2 = memref.load %arg1[%c0_1, %c0_2] : memref<3x5xf32, #tpu.memory_space<smem>>
    %3 = vector.broadcast %2 : f32 to vector<1x2xf32>
    %4 = arith.mulf %1, %3 : vector<1x2xf32>
    %c0_3 = arith.constant 0 : index
    %c0_4 = arith.constant 0 : index
    %5 = memref.load %arg2[%c0_3, %c0_4] : memref<1x3xf32, #tpu.memory_space<smem>>
    %6 = vector.broadcast %5 : f32 to vector<1x2xf32>
    %7 = arith.addf %4, %6 : vector<1x2xf32>
    %8 = vector.extract_strided_slice %0 {offsets = [1, 0], sizes = [1, 2], strides = [1, 1]} : vector<5x2xf32> to vector<1x2xf32>
    %c0_5 = arith.constant 0 : index
    %c1 = arith.constant 1 : index
    %9 = memref.load %arg1[%c0_5, %c1] : memref<3x5xf32, #tpu.memory_space<smem>>
    %10 = vector.broadcast %9 : f32 to vector<1x2xf32>
    %11 = arith.mulf %8, %10 : vector<1x2xf32>
    %12 = arith.addf %7, %11 : vector<1x2xf32>
    %13 = vector.extract_strided_slice %0 {offsets = [2, 0], sizes = [1, 2], strides = [1, 1]} : vector<5x2xf32> to vector<1x2xf32>
    %c0_6 = arith.constant 0 : index
    %c2 = arith.constant 2 : index
    %14 = memref.load %arg1[%c0_6, %c2] : memref<3x5xf32, #tpu.memory_space<smem>>
    %15 = vector.broadcast %14 : f32 to vector<1x2xf32>
    %16 = arith.mulf %13, %15 : vector<1x2xf32>
    %17 = arith.addf %12, %16 : vector<1x2xf32>
    %18 = vector.extract_strided_slice %0 {offsets = [3, 0], sizes = [1, 2], strides = [1, 1]} : vector<5x2xf32> to vector<1x2xf32>
    %c0_7 = arith.constant 0 : index
    %c3 = arith.constant 3 : index
    %19 = memref.load %arg1[%c0_7, %c3] : memref<3x5xf32, #tpu.memory_space<smem>>
    %20 = vector.broadcast %19 : f32 to vector<1x2xf32>
    %21 = arith.mulf %18, %20 : vector<1x2xf32>
    %22 = arith.addf %17, %21 : vector<1x2xf32>
    %23 = vector.extract_strided_slice %0 {offsets = [4, 0], sizes = [1, 2], strides = [1, 1]} : vector<5x2xf32> to vector<1x2xf32>
    %c0_8 = arith.constant 0 : index
    %c4 = arith.constant 4 : index
    %24 = memref.load %arg1[%c0_8, %c4] : memref<3x5xf32, #tpu.memory_space<smem>>
    %25 = vector.broadcast %24 : f32 to vector<1x2xf32>
    %26 = arith.mulf %23, %25 : vector<1x2xf32>
    %27 = arith.addf %22, %26 : vector<1x2xf32>
    %28 = vector.extract_strided_slice %0 {offsets = [0, 0], sizes = [1, 2], strides = [1, 1]} : vector<5x2xf32> to vector<1x2xf32>
    %c1_9 = arith.constant 1 : index
    %c0_10 = arith.constant 0 : index
    %29 = memref.load %arg1[%c1_9, %c0_10] : memref<3x5xf32, #tpu.memory_space<smem>>
    %30 = vector.broadcast %29 : f32 to vector<1x2xf32>
    %31 = arith.mulf %28, %30 : vector<1x2xf32>
    %c0_11 = arith.constant 0 : index
    %c1_12 = arith.constant 1 : index
    %32 = memref.load %arg2[%c0_11, %c1_12] : memref<1x3xf32, #tpu.memory_space<smem>>
    %33 = vector.broadcast %32 : f32 to vector<1x2xf32>
    %34 = arith.addf %31, %33 : vector<1x2xf32>
    %35 = vector.extract_strided_slice %0 {offsets = [1, 0], sizes = [1, 2], strides = [1, 1]} : vector<5x2xf32> to vector<1x2xf32>
    %c1_13 = arith.constant 1 : index
    %c1_14 = arith.constant 1 : index
    %36 = memref.load %arg1[%c1_13, %c1_14] : memref<3x5xf32, #tpu.memory_space<smem>>
    %37 = vector.broadcast %36 : f32 to vector<1x2xf32>
    %38 = arith.mulf %35, %37 : vector<1x2xf32>
    %39 = arith.addf %34, %38 : vector<1x2xf32>
    %40 = vector.extract_strided_slice %0 {offsets = [2, 0], sizes = [1, 2], strides = [1, 1]} : vector<5x2xf32> to vector<1x2xf32>
    %c1_15 = arith.constant 1 : index
    %c2_16 = arith.constant 2 : index
    %41 = memref.load %arg1[%c1_15, %c2_16] : memref<3x5xf32, #tpu.memory_space<smem>>
    %42 = vector.broadcast %41 : f32 to vector<1x2xf32>
    %43 = arith.mulf %40, %42 : vector<1x2xf32>
    %44 = arith.addf %39, %43 : vector<1x2xf32>
    %45 = vector.extract_strided_slice %0 {offsets = [3, 0], sizes = [1, 2], strides = [1, 1]} : vector<5x2xf32> to vector<1x2xf32>
    %c1_17 = arith.constant 1 : index
    %c3_18 = arith.constant 3 : index
    %46 = memref.load %arg1[%c1_17, %c3_18] : memref<3x5xf32, #tpu.memory_space<smem>>
    %47 = vector.broadcast %46 : f32 to vector<1x2xf32>
    %48 = arith.mulf %45, %47 : vector<1x2xf32>
    %49 = arith.addf %44, %48 : vector<1x2xf32>
    %50 = vector.extract_strided_slice %0 {offsets = [4, 0], sizes = [1, 2], strides = [1, 1]} : vector<5x2xf32> to vector<1x2xf32>
    %c1_19 = arith.constant 1 : index
    %c4_20 = arith.constant 4 : index
    %51 = memref.load %arg1[%c1_19, %c4_20] : memref<3x5xf32, #tpu.memory_space<smem>>
    %52 = vector.broadcast %51 : f32 to vector<1x2xf32>
    %53 = arith.mulf %50, %52 : vector<1x2xf32>
    %54 = arith.addf %49, %53 : vector<1x2xf32>
    %55 = vector.extract_strided_slice %0 {offsets = [0, 0], sizes = [1, 2], strides = [1, 1]} : vector<5x2xf32> to vector<1x2xf32>
    %c2_21 = arith.constant 2 : index
    %c0_22 = arith.constant 0 : index
    %56 = memref.load %arg1[%c2_21, %c0_22] : memref<3x5xf32, #tpu.memory_space<smem>>
    %57 = vector.broadcast %56 : f32 to vector<1x2xf32>
    %58 = arith.mulf %55, %57 : vector<1x2xf32>
    %c0_23 = arith.constant 0 : index
    %c2_24 = arith.constant 2 : index
    %59 = memref.load %arg2[%c0_23, %c2_24] : memref<1x3xf32, #tpu.memory_space<smem>>
    %60 = vector.broadcast %59 : f32 to vector<1x2xf32>
    %61 = arith.addf %58, %60 : vector<1x2xf32>
    %62 = vector.extract_strided_slice %0 {offsets = [1, 0], sizes = [1, 2], strides = [1, 1]} : vector<5x2xf32> to vector<1x2xf32>
    %c2_25 = arith.constant 2 : index
    %c1_26 = arith.constant 1 : index
    %63 = memref.load %arg1[%c2_25, %c1_26] : memref<3x5xf32, #tpu.memory_space<smem>>
    %64 = vector.broadcast %63 : f32 to vector<1x2xf32>
    %65 = arith.mulf %62, %64 : vector<1x2xf32>
    %66 = arith.addf %61, %65 : vector<1x2xf32>
    %67 = vector.extract_strided_slice %0 {offsets = [2, 0], sizes = [1, 2], strides = [1, 1]} : vector<5x2xf32> to vector<1x2xf32>
    %c2_27 = arith.constant 2 : index
    %c2_28 = arith.constant 2 : index
    %68 = memref.load %arg1[%c2_27, %c2_28] : memref<3x5xf32, #tpu.memory_space<smem>>
    %69 = vector.broadcast %68 : f32 to vector<1x2xf32>
    %70 = arith.mulf %67, %69 : vector<1x2xf32>
    %71 = arith.addf %66, %70 : vector<1x2xf32>
    %72 = vector.extract_strided_slice %0 {offsets = [3, 0], sizes = [1, 2], strides = [1, 1]} : vector<5x2xf32> to vector<1x2xf32>
    %c2_29 = arith.constant 2 : index
    %c3_30 = arith.constant 3 : index
    %73 = memref.load %arg1[%c2_29, %c3_30] : memref<3x5xf32, #tpu.memory_space<smem>>
    %74 = vector.broadcast %73 : f32 to vector<1x2xf32>
    %75 = arith.mulf %72, %74 : vector<1x2xf32>
    %76 = arith.addf %71, %75 : vector<1x2xf32>
    %77 = vector.extract_strided_slice %0 {offsets = [4, 0], sizes = [1, 2], strides = [1, 1]} : vector<5x2xf32> to vector<1x2xf32>
    %c2_31 = arith.constant 2 : index
    %c4_32 = arith.constant 4 : index
    %78 = memref.load %arg1[%c2_31, %c4_32] : memref<3x5xf32, #tpu.memory_space<smem>>
    %79 = vector.broadcast %78 : f32 to vector<1x2xf32>
    %80 = arith.mulf %77, %79 : vector<1x2xf32>
    %81 = arith.addf %76, %80 : vector<1x2xf32>
    %82 = tpu.concatenate %27, %54, %81 in 0 : vector<1x2xf32>, vector<1x2xf32>, vector<1x2xf32> -> vector<3x2xf32>
    %c0_33 = arith.constant 0 : index
    %c0_34 = arith.constant 0 : index
    %83 = vector.load %arg4[%c0_33, %c0_34] : memref<3x2xf32, #tpu.memory_space<vmem>>, vector<3x2xf32>
    tpu.vector_store %arg4[%c0_33, %c0_34], %82 {strides = array<i32>} : memref<3x2xf32, #tpu.memory_space<vmem>>, vector<3x2xf32>,
    return
  }
  func.func @transform_0(%arg0: i32) -> (i32, i32) {
    %c0_i32 = arith.constant 0 : i32
    %c0_i32_0 = arith.constant 0 : i32
    %c0_i32_1 = arith.constant 0 : i32
    return %c0_i32, %c0_i32_0 : i32, i32
  }
  func.func @transform_1(%arg0: i32) -> (i32, i32) {
    %c0_i32 = arith.constant 0 : i32
    %c0_i32_0 = arith.constant 0 : i32
    %c0_i32_1 = arith.constant 0 : i32
    return %c0_i32, %c0_i32_0 : i32, i32
  }
  func.func @transform_2(%arg0: i32) -> (i32, i32) {
    %c0_i32 = arith.constant 0 : i32
    %c0_i32_0 = arith.constant 0 : i32
    return %c0_i32, %arg0 : i32, i32
  }
  func.func @transform_3(%arg0: i32) -> (i32, i32) {
    %c0_i32 = arith.constant 0 : i32
    %c0_i32_0 = arith.constant 0 : i32
    return %c0_i32, %arg0 : i32, i32
  }
}

</mosaic_0001>

<llo_original>
// kernel: tpu_custom_call.1
$region0: #{tpu_custom_call.1}
  #allocation0 [shape = 'u32[]', space=smem, size = 0x4, offset = 0x4, fixed_abs, tag = 'smem constant byte address 0x4 - core index']
  #allocation1 [shape = 'u32[144,128]{1,0:T(1,128)}', space=vmem, size = 0x12000, scoped, tag = 'internal scratch']
  %s0 = inlined_call_operand.vmem [shape: f32[3,5], index: 0, kind: input, shape index: {}]
  %s1 = inlined_call_operand.vmem [shape: f32[1,3], index: 1, kind: input, shape index: {}]
  %s2 = inlined_call_operand.vmem [shape: f32[5,2], index: 2, kind: input, shape index: {}]
  %s3 = inlined_call_operand.vmem [shape: f32[3,2], index: 3, kind: output, shape index: {}]
  %s4 = sld [smem:[#allocation0]]
  $region30: #{tpu_custom_call.1} parent=0
    _
  %s6 = ssub.s32 1, %s4
  %s7 = scalar_select 0, %s6, %s4
  $region1: #{tpu_custom_call.1} parent=0
    #allocation2 [shape = 'u8[2048]{0}', space=smem, size = 0x800, scoped, tag = 'input window, operand 0, single buffered']
    #allocation3 [shape = 's32[1]{0}', space=sflag, size = 0x4, scoped, tag = 'scoped memory for tpu_custom_call.1']
    #allocation4 [shape = 'u8[512]{0}', space=smem, size = 0x200, scoped, tag = 'input window, operand 1, single buffered']
    #allocation5 [shape = 's32[1]{0}', space=sflag, size = 0x4, scoped, tag = 'scoped memory for tpu_custom_call.1']
    %8 = vsyncpa [#allocation3], 0
    %9 = vsyncpa [#allocation5], 0
    // Predicated region
    $region2: #{tpu_custom_call.1} parent=1 // pred_check
      _
    $region3: #{tpu_custom_call.1} parent=1 // pred_check_branch
      %11 = sbr.rel (0) target = $region5
    $region4: #{tpu_custom_call.1} parent=1 // pred_region
      %s13 = ssub.s32 64, 64
      %14 = vsyncadd [#allocation3], %s13
      %s16 = sshll.u32 %s0, 4
      %s17 = int_to_ptr.vmem [resolvable:$true] %s16
      %19 = dma.vmem_to_smem %s17, 64, [#allocation2], [#allocation3]
    $region5: #{tpu_custom_call.1} parent=1 // pred_fallthru
      _
    // Predicated region
    $region6: #{tpu_custom_call.1} parent=1 // pred_check
      _
    $region7: #{tpu_custom_call.1} parent=1 // pred_check_branch
      %21 = sbr.rel (0) target = $region9
    $region8: #{tpu_custom_call.1} parent=1 // pred_region
      %s23 = ssub.s32 16, 16
      %24 = vsyncadd [#allocation5], %s23
      %s26 = sshll.u32 %s1, 4
      %s27 = int_to_ptr.vmem [resolvable:$true] %s26
      %29 = dma.vmem_to_smem %s27, 16, [#allocation4], [#allocation5]
    $region9: #{tpu_custom_call.1} parent=1 // pred_fallthru
      _
    // Predicated region
    $region10: #{tpu_custom_call.1} parent=1 // pred_check
      _
    $region11: #{tpu_custom_call.1} parent=1 // pred_check_branch
      %31 = sbr.rel (0) target = $region13
    $region12: #{tpu_custom_call.1} parent=1 // pred_region
      _
    $region13: #{tpu_custom_call.1} parent=1 // pred_fallthru
      _
    // Predicated region
    $region14: #{tpu_custom_call.1} parent=1 // pred_check
      _
    $region15: #{tpu_custom_call.1} parent=1 // pred_check_branch
      %33 = sbr.rel (0) target = $region17
    $region16: #{tpu_custom_call.1} parent=1 // pred_region
      %34 = dma.done [#allocation3], 64
    $region17: #{tpu_custom_call.1} parent=1 // pred_fallthru
      _
    // Predicated region
    $region18: #{tpu_custom_call.1} parent=1 // pred_check
      _
    $region19: #{tpu_custom_call.1} parent=1 // pred_check_branch
      %36 = sbr.rel (0) target = $region21
    $region20: #{tpu_custom_call.1} parent=1 // pred_region
      %37 = dma.done [#allocation5], 16
    $region21: #{tpu_custom_call.1} parent=1 // pred_fallthru
      _
    %38 = sfence
    %v39 = vld [vmem:[%s2] sm:$0x1f]
    %s40 = sld [smem:[#allocation2]]
    %v41 = vstv %s40
    %v42 = vmul.f32 %v39, %v41
    %s43 = sld [smem:[#allocation4]]
    %v44 = vstv %s43
    %v45 = vadd.f32 %v42, %v44
    %s46 = sld [smem:[#allocation2 + $0x1]]
    %v47 = vstv %s46
    %v48 = vmul.f32 %v39, %v47
    %v50 = vrot.slane %v48, 1
    %v52 = vadd.f32 %v45, %v50
    %s53 = sld [smem:[#allocation2 + $0x2]]
    %v54 = vstv %s53
    %v55 = vmul.f32 %v39, %v54
    %v57 = vrot.slane %v55, 2
    %v59 = vadd.f32 %v52, %v57
    %s60 = sld [smem:[#allocation2 + $0x3]]
    %v61 = vstv %s60
    %v62 = vmul.f32 %v39, %v61
    %v64 = vrot.slane %v62, 3
    %v66 = vadd.f32 %v59, %v64
    %s67 = sld [smem:[#allocation2 + $0x4]]
    %v68 = vstv %s67
    %v69 = vmul.f32 %v39, %v68
    %v71 = vrot.slane %v69, 4
    %v73 = vadd.f32 %v66, %v71
    %s74 = sld [smem:[#allocation2 + $0x80]]
    %v75 = vstv %s74
    %v76 = vmul.f32 %v39, %v75
    %s77 = sld [smem:[#allocation4 + $0x1]]
    %v78 = vstv %s77
    %v79 = vadd.f32 %v76, %v78
    %s80 = sld [smem:[#allocation2 + $0x81]]
    %v81 = vstv %s80
    %v82 = vmul.f32 %v39, %v81
    %v84 = vrot.slane %v82, 1
    %v86 = vadd.f32 %v79, %v84
    %s87 = sld [smem:[#allocation2 + $0x82]]
    %v88 = vstv %s87
    %v89 = vmul.f32 %v39, %v88
    %v91 = vrot.slane %v89, 2
    %v93 = vadd.f32 %v86, %v91
    %s94 = sld [smem:[#allocation2 + $0x83]]
    %v95 = vstv %s94
    %v96 = vmul.f32 %v39, %v95
    %v98 = vrot.slane %v96, 3
    %v100 = vadd.f32 %v93, %v98
    %s101 = sld [smem:[#allocation2 + $0x84]]
    %v102 = vstv %s101
    %v103 = vmul.f32 %v39, %v102
    %v105 = vrot.slane %v103, 4
    %v107 = vadd.f32 %v100, %v105
    %s108 = sld [smem:[#allocation2 + $0x100]]
    %v109 = vstv %s108
    %v110 = vmul.f32 %v39, %v109
    %s111 = sld [smem:[#allocation4 + $0x2]]
    %v112 = vstv %s111
    %v113 = vadd.f32 %v110, %v112
    %s114 = sld [smem:[#allocation2 + $0x101]]
    %v115 = vstv %s114
    %v116 = vmul.f32 %v39, %v115
    %v118 = vrot.slane %v116, 1
    %v120 = vadd.f32 %v113, %v118
    %s121 = sld [smem:[#allocation2 + $0x102]]
    %v122 = vstv %s121
    %v123 = vmul.f32 %v39, %v122
    %v125 = vrot.slane %v123, 2
    %v127 = vadd.f32 %v120, %v125
    %s128 = sld [smem:[#allocation2 + $0x103]]
    %v129 = vstv %s128
    %v130 = vmul.f32 %v39, %v129
    %v132 = vrot.slane %v130, 3
    %v134 = vadd.f32 %v127, %v132
    %s135 = sld [smem:[#allocation2 + $0x104]]
    %v136 = vstv %s135
    %v137 = vmul.f32 %v39, %v136
    %v139 = vrot.slane %v137, 4
    %v141 = vadd.f32 %v134, %v139
    %v143 = vrot.slane %v107, 7
    %v146 = vrot.slane %v141, 6
    %vm148 = vcmask 1040384
    %v149 = vsel %vm148, %v73, %v143
    %vm150 = vcmask 1041408
    %v151 = vsel %vm150, %v149, %v146
    %vm152 = vcmask 10240
    %153 = vst.msk [vmem:[%s3] sm:$0x7] %vm152, %v151
    // Predicated region
    $region22: #{tpu_custom_call.1} parent=1 // pred_check
      _
    $region23: #{tpu_custom_call.1} parent=1 // pred_check_branch
      %155 = sbr.rel (0) target = $region25
    $region24: #{tpu_custom_call.1} parent=1 // pred_region
      _
    $region25: #{tpu_custom_call.1} parent=1 // pred_fallthru
      _
    // Predicated region
    $region26: #{tpu_custom_call.1} parent=1 // pred_check
      _
    $region27: #{tpu_custom_call.1} parent=1 // pred_check_branch
      %157 = sbr.rel (0) target = $region29
    $region28: #{tpu_custom_call.1} parent=1 // pred_region
      _
    $region29: #{tpu_custom_call.1} parent=1 // pred_fallthru
      _
    %158 = vsyncpa [#allocation3], 1
    %159 = vsyncpa [#allocation5], 1

</llo_original>
